<compile_context>
chip_gen: v6e
topology: v6e:2x2x1
jax: 0.10.0
libtpu: 0.0.40
codegen_flags: <defaults>
</compile_context>

<pallas_src>
import jax
import jax.numpy as jnp
from jax.experimental import pallas as pl
from jax.experimental.pallas import tpu as pltpu

_LANE = 128
_MiB = 1024 * 1024


def _round_up(x: int, m: int) -> int:
    return (x + m - 1) // m * m


def _sublane(dtype) -> int:
    return {4: 8, 2: 16, 1: 32}.get(jnp.dtype(dtype).itemsize, 8)


def _chip_info():
    """(physical VMEM bytes, MXU width, has-two-TensorCores) — best effort."""
    kind = ""
    try:
        kind = jax.devices()[0].device_kind.lower()
    except Exception:
        pass
    vmem = None
    try:
        vmem = int(pltpu.get_tpu_info().vmem_capacity_bytes)
    except Exception:
        pass
    is_v7 = "v7" in kind
    if vmem is None:
        vmem = 64 * _MiB if is_v7 else 128 * _MiB   # v7x: 64 MiB, v5e/v6e: 128 MiB
    old_gen = any(t in kind for t in ("v2", "v3", "v4", "v5"))
    mxu = 128 if old_gen else 256                    # v5e 4x128^2, v6e/v7x 2x256^2
    return vmem, mxu, is_v7


# --------------------------------------------------------------------------
# Kernels
# --------------------------------------------------------------------------
def _mlp_resident_kernel(x_ref, w1_ref, b1_ref, w2_ref, b2_ref, o_ref):
    """out = relu(x @ W1 + b1) @ W2 + b2 with all weights VMEM-resident."""
    h = jnp.dot(x_ref[...], w1_ref[...], preferred_element_type=jnp.float32)
    h = jnp.maximum(h + b1_ref[...].astype(jnp.float32), 0.0)
    out = jnp.dot(h.astype(w2_ref.dtype), w2_ref[...],
                  preferred_element_type=jnp.float32)
    o_ref[...] = (out + b2_ref[...].astype(jnp.float32)).astype(o_ref.dtype)


def _mlp_tiled_kernel_f32(x_ref, w1_ref, b1_ref, w2_ref, b2_ref, o_ref):
    """Hidden-tiled reduction, f32 output: accumulate directly in o_ref."""
    j = pl.program_id(1)

    @pl.when(j == 0)
    def _init():
        o_ref[...] = jnp.zeros_like(o_ref)

    h = jnp.dot(x_ref[...], w1_ref[...], preferred_element_type=jnp.float32)
    h = jnp.maximum(h + b1_ref[...].astype(jnp.float32), 0.0)
    o_ref[...] += jnp.dot(h.astype(w2_ref.dtype), w2_ref[...],
                          preferred_element_type=jnp.float32)

    @pl.when(j == pl.num_programs(1) - 1)
    def _finalize():
        o_ref[...] += b2_ref[...].astype(jnp.float32)


def _mlp_tiled_kernel_acc(x_ref, w1_ref, b1_ref, w2_ref, b2_ref, o_ref, acc_ref):
    """Hidden-tiled reduction, non-f32 output: f32 scratch accumulator."""
    j = pl.program_id(1)

    @pl.when(j == 0)
    def _init():
        acc_ref[...] = jnp.zeros_like(acc_ref)

    h = jnp.dot(x_ref[...], w1_ref[...], preferred_element_type=jnp.float32)
    h = jnp.maximum(h + b1_ref[...].astype(jnp.float32), 0.0)
    acc_ref[...] += jnp.dot(h.astype(w2_ref.dtype), w2_ref[...],
                            preferred_element_type=jnp.float32)

    @pl.when(j == pl.num_programs(1) - 1)
    def _finalize():
        o_ref[...] = (acc_ref[...] + b2_ref[...].astype(jnp.float32)
                      ).astype(o_ref.dtype)


# --------------------------------------------------------------------------
# Wrapper
# --------------------------------------------------------------------------
def make_two_layer_net(w1, b1, w2, b2):
    """Pads / pre-packs parameters ONCE and returns `forward(x, ...)`.

    w1: [K, H]  (pre-transposed vs PyTorch's [H, K])   b1: [H]
    w2: [H, N]  (pre-transposed)                       b2: [N]

    bf16 parameters / activations are supported (sublane handling adapts);
    keep them bf16 for peak MXU throughput — accumulation stays f32 inside.
    """
    K, H = w1.shape
    H2, N = w2.shape
    assert H2 == H and b1.shape == (H,) and b2.shape == (N,)

    vmem_bytes, mxu, two_cores = _chip_info()
    w_dtype = w1.dtype
    w_isz = jnp.dtype(w_dtype).itemsize

    K_p = _round_up(K, _LANE)
    th_pref = 256 if mxu >= 256 else 128             # v6e/v7x: feed full MXU width
    H_p = _round_up(H, th_pref if H > _LANE else _LANE)
    N_p = _round_up(N, _LANE)

    # Pad once, outside the hot path.  Zero padding is exact for
    # Linear -> ReLU -> Linear: padded hidden cols give relu(0)=0 and pair with
    # zero W2 rows; padded output cols are sliced off.
    w1p = jnp.pad(w1, ((0, K_p - K), (0, H_p - H)))
    b1p = jnp.pad(b1.reshape(1, H), ((0, 0), (0, H_p - H)))
    w2p = jnp.pad(w2, ((0, H_p - H), (0, N_p - N)))
    b2p = jnp.pad(b2.reshape(1, N), ((0, 0), (0, N_p - N)))

    weight_bytes = (K_p * H_p + H_p + H_p * N_p + N_p) * w_isz
    budget = max(vmem_bytes - 8 * _MiB, 32 * _MiB)   # leave Mosaic headroom

    def forward(x, *, tm=None, th=None, force_pallas=False, force_tiled=False):
        M, Kx = x.shape
        assert Kx == K, f"expected x with {K} features, got {Kx}"
        out_dtype = x.dtype
        x_isz = jnp.dtype(x.dtype).itemsize
        out_isz = jnp.dtype(out_dtype).itemsize
        s = max(_sublane(x.dtype), _sublane(w_dtype))   # sublane rounding for rows

        # Tiny problems: a fused XLA dot/relu/dot beats pallas_call fixed cost.
        if not force_pallas and (M * H < 512 * 512):
            h = jnp.maximum(x @ w1 + b1.reshape(1, H), 0.0)
            return h @ w2 + b2.reshape(1, N)

        # Hot path pads K lanes only; the M remainder is handled by a cdiv grid
        # (ragged rows are masked on write-back and never read back).
        x_in = jnp.pad(x, ((0, 0), (0, K_p - K))) if K_p != K else x

        # ---- row tile (tm) ------------------------------------------------
        if tm is None:
            cap = 512 if w_isz >= 4 else 1024
            tm = min(cap, _round_up(M, s))
            n_tiles = pl.cdiv(M, tm)
            if two_cores and n_tiles > 1 and n_tiles % 2 == 1:
                # even M-tile count so both v7x TensorCores stay busy
                tm = _round_up(pl.cdiv(M, n_tiles + 1), s)
        tm = max(s, min(_round_up(tm, s), _round_up(M, s)))

        # ---- hidden tile (th) ---------------------------------------------
        if th is None:
            th = th_pref
        th = min(th, H_p)
        if H_p % th != 0:
            th = _LANE                              # H_p is always a 128-multiple

        # ---- VMEM footprint estimates (double-buffered tiles) --------------
        def resident_vmem(tm_):
            return (2 * tm_ * K_p * x_isz            # x tile
                    + 2 * weight_bytes               # W1/b1/W2/b2 (2 bufs, 1 DMA)
                    + 2 * tm_ * N_p * out_isz        # out tile
                    + tm_ * H_p * 4 + tm_ * N_p * 4)  # f32 intermediates

        def tiled_vmem(tm_, th_):
            w_tile = (K_p * th_ + th_ + th_ * N_p + N_p) * w_isz
            acc = 0 if out_dtype == jnp.float32 else tm_ * N_p * 4
            return (2 * tm_ * K_p * x_isz + 2 * w_tile
                    + 2 * tm_ * N_p * out_isz + tm_ * th_ * 4 + acc)

        use_resident = (not force_tiled) and (2 * weight_bytes <= budget // 2)
        if use_resident:
            while tm > s and resident_vmem(tm) > budget:
                tm = _round_up(tm // 2, s)
            if resident_vmem(tm) > budget:
                use_resident = False
        if not use_resident:
            while tm > s and tiled_vmem(tm, th) > budget:
                tm = _round_up(tm // 2, s)
            if tiled_vmem(tm, th) > budget and th > _LANE:
                th = _LANE

        m_tiles = pl.cdiv(M, tm)
        est = resident_vmem(tm) if use_resident else tiled_vmem(tm, th)
        vmem_limit = int(min(max(48 * _MiB, 2 * est), budget))

        flops = 2 * M * H_p * (K_p + N_p)
        bytes_acc = (M * K_p * x_isz + M * N_p * out_isz
                     + (1 if use_resident else m_tiles) * weight_bytes)
        try:
            cost = pl.CostEstimate(flops=flops, transcendentals=0,
                                   bytes_accessed=int(bytes_acc))
        except Exception:
            cost = None

        if use_resident:
            # 1-D grid over M; weights DMA'd once and held resident in VMEM.
            out_p = pl.pallas_call(
                _mlp_resident_kernel,
                out_shape=jax.ShapeDtypeStruct((M, N_p), out_dtype),
                grid_spec=pltpu.PrefetchScalarGridSpec(
                    num_scalar_prefetch=0,
                    grid=(m_tiles,),
                    in_specs=[
                        pl.BlockSpec((tm, K_p), lambda i: (i, 0)),
                        pl.BlockSpec((K_p, H_p), lambda i: (0, 0)),
                        pl.BlockSpec((1, H_p), lambda i: (0, 0)),
                        pl.BlockSpec((H_p, N_p), lambda i: (0, 0)),
                        pl.BlockSpec((1, N_p), lambda i: (0, 0)),
                    ],
                    out_specs=pl.BlockSpec((tm, N_p), lambda i: (i, 0)),
                ),
                compiler_params=pltpu.CompilerParams(
                    dimension_semantics=("parallel",),
                    vmem_limit_bytes=vmem_limit,
                ),
                cost_estimate=cost,
            )(x_in, w1p, b1p, w2p, b2p)
        else:
            # 2-D grid: M tiles (parallel) x hidden tiles (reduction).
            # TODO(synk): if profiling on v5e shows exposed weight DMA, add
            # pipeline_mode=pl.Buffered(3) on the W1/W2 specs (skip on v7x).
            f32_out = out_dtype == jnp.float32
            kernel = _mlp_tiled_kernel_f32 if f32_out else _mlp_tiled_kernel_acc
            scratch = [] if f32_out else [pltpu.VMEM((tm, N_p), jnp.float32)]
            out_p = pl.pallas_call(
                kernel,
                out_shape=jax.ShapeDtypeStruct((M, N_p), out_dtype),
                grid_spec=pltpu.PrefetchScalarGridSpec(
                    num_scalar_prefetch=0,
                    grid=(m_tiles, H_p // th),
                    in_specs=[
                        pl.BlockSpec((tm, K_p), lambda i, j: (i, 0)),
                        pl.BlockSpec((K_p, th), lambda i, j: (0, j)),
                        pl.BlockSpec((1, th), lambda i, j: (0, j)),
                        pl.BlockSpec((th, N_p), lambda i, j: (j, 0)),
                        pl.BlockSpec((1, N_p), lambda i, j: (0, 0)),
                    ],
                    out_specs=pl.BlockSpec((tm, N_p), lambda i, j: (i, 0)),
                    scratch_shapes=scratch,
                ),
                compiler_params=pltpu.CompilerParams(
                    dimension_semantics=("parallel", "arbitrary"),
                    vmem_limit_bytes=vmem_limit,
                ),
                cost_estimate=cost,
            )(x_in, w1p, b1p, w2p, b2p)

        return out_p[:, :N] if N_p != N else out_p

    return forward


if __name__ == "__main__":
    # Small shapes consistent with the module's Linear->ReLU->Linear forward.
    # Feature dims are deliberately not multiples of 128 so lane padding is
    # exercised; M/tm/th below give both a 1-step resident grid and a
    # 2x2 tiled grid.
    M, input_size, hidden_size, output_size = 128, 48, 160, 24

    key = jax.random.PRNGKey(0)
    kx, kw1, kb1, kw2, kb2 = jax.random.split(key, 5)

    x = jax.random.normal(kx, (M, input_size), dtype=jnp.float32)
    # Deterministic parameter init (Kaiming-uniform-like bounds, fixed seed).
    bound1 = 1.0 / (input_size ** 0.5)
    bound2 = 1.0 / (hidden_size ** 0.5)
    w1 = jax.random.uniform(kw1, (input_size, hidden_size),
                            minval=-bound1, maxval=bound1, dtype=jnp.float32)
    b1 = jax.random.uniform(kb1, (hidden_size,),
                            minval=-bound1, maxval=bound1, dtype=jnp.float32)
    w2 = jax.random.uniform(kw2, (hidden_size, output_size),
                            minval=-bound2, maxval=bound2, dtype=jnp.float32)
    b2 = jax.random.uniform(kb2, (output_size,),
                            minval=-bound2, maxval=bound2, dtype=jnp.float32)

    forward = make_two_layer_net(w1, b1, w2, b2)
    y_ref = jnp.maximum(x @ w1 + b1[None, :], 0.0) @ w2 + b2[None, :]

    # 1) Weights-resident fast path (1-D grid over M).
    y_res = jax.block_until_ready(forward(x, force_pallas=True))
    assert y_res.shape == (M, output_size)
    assert jnp.allclose(y_res, y_ref, atol=1e-5, rtol=1e-5)

    # 2) Hidden-tiled fallback (2 M-tiles x 2 hidden-tiles, f32 accumulation
    #    directly in the resident output block).
    y_tiled = jax.block_until_ready(
        forward(x, force_pallas=True, force_tiled=True, tm=64, th=128))
    assert y_tiled.shape == (M, output_size)
    assert jnp.allclose(y_tiled, y_ref, atol=1e-5, rtol=1e-5)

    print("KERNEL_OK")
</pallas_src>

<mosaic_0001>
module attributes {stable_mosaic.version = 11 : i64} {
  func.func @_mlp_resident_kernel(%arg0: i32, %arg1: memref<128x128xf32, #tpu.memory_space<vmem>>, %arg2: memref<128x256xf32, #tpu.memory_space<vmem>>, %arg3: memref<1x256xf32, #tpu.memory_space<vmem>>, %arg4: memref<256x128xf32, #tpu.memory_space<vmem>>, %arg5: memref<1x128xf32, #tpu.memory_space<vmem>>, %arg6: memref<128x128xf32, #tpu.memory_space<vmem>>) attributes {dimension_semantics = [#tpu.dimension_semantics<parallel>], iteration_bounds = array<i64: 1>, scalar_prefetch = 0 : i64, scratch_operands = 0 : i64, tpu.core_type = #tpu.core_type<tc>, window_params = [{transform_indices = @transform_0, window_bounds = array<i64: 128, 128>}, {pipeline_mode = #tpu.pipeline_mode<synchronous>, transform_indices = @transform_1, window_bounds = array<i64: 128, 256>}, {pipeline_mode = #tpu.pipeline_mode<synchronous>, transform_indices = @transform_2, window_bounds = array<i64: 1, 256>}, {pipeline_mode = #tpu.pipeline_mode<synchronous>, transform_indices = @transform_3, window_bounds = array<i64: 256, 128>}, {pipeline_mode = #tpu.pipeline_mode<synchronous>, transform_indices = @transform_4, window_bounds = array<i64: 1, 128>}, {transform_indices = @transform_5, window_bounds = array<i64: 128, 128>}]} {
    %c0 = arith.constant 0 : index
    %c0_0 = arith.constant 0 : index
    %0 = vector.load %arg1[%c0, %c0_0] : memref<128x128xf32, #tpu.memory_space<vmem>>, vector<128x128xf32>
    %c0_1 = arith.constant 0 : index
    %c0_2 = arith.constant 0 : index
    %1 = vector.load %arg2[%c0_1, %c0_2] : memref<128x256xf32, #tpu.memory_space<vmem>>, vector<128x256xf32>
    %cst = arith.constant dense<0.000000e+00> : vector<128x256xf32>
    %2 = tpu.matmul %0, %1, %cst {dimension_numbers = #tpu.dot_dimension_numbers<[1], [0], [0], [1], [0, 0, 1, 1], [], []>} : vector<128x128xf32>, vector<128x256xf32>, vector<128x256xf32> -> vector<128x256xf32>
    %c0_3 = arith.constant 0 : index
    %c0_4 = arith.constant 0 : index
    %3 = vector.load %arg3[%c0_3, %c0_4] : memref<1x256xf32, #tpu.memory_space<vmem>>, vector<1x256xf32>
    %4 = vector.broadcast %3 : vector<1x256xf32> to vector<128x256xf32>
    %5 = arith.addf %2, %4 : vector<128x256xf32>
    %cst_5 = arith.constant 0.000000e+00 : f32
    %6 = vector.broadcast %cst_5 : f32 to vector<128x256xf32>
    %7 = arith.maximumf %5, %6 : vector<128x256xf32>
    %c0_6 = arith.constant 0 : index
    %c0_7 = arith.constant 0 : index
    %8 = vector.load %arg4[%c0_6, %c0_7] : memref<256x128xf32, #tpu.memory_space<vmem>>, vector<256x128xf32>
    %cst_8 = arith.constant dense<0.000000e+00> : vector<128x128xf32>
    %9 = tpu.matmul %7, %8, %cst_8 {dimension_numbers = #tpu.dot_dimension_numbers<[1], [0], [0], [1], [0, 0, 1, 1], [], []>} : vector<128x256xf32>, vector<256x128xf32>, vector<128x128xf32> -> vector<128x128xf32>
    %c0_9 = arith.constant 0 : index
    %c0_10 = arith.constant 0 : index
    %10 = vector.load %arg5[%c0_9, %c0_10] : memref<1x128xf32, #tpu.memory_space<vmem>>, vector<1x128xf32>
    %11 = vector.broadcast %10 : vector<1x128xf32> to vector<128x128xf32>
    %12 = arith.addf %9, %11 : vector<128x128xf32>
    %c0_11 = arith.constant 0 : index
    %c0_12 = arith.constant 0 : index
    %13 = vector.load %arg6[%c0_11, %c0_12] : memref<128x128xf32, #tpu.memory_space<vmem>>, vector<128x128xf32>
    tpu.vector_store %arg6[%c0_11, %c0_12], %12 {strides = array<i32>} : memref<128x128xf32, #tpu.memory_space<vmem>>, vector<128x128xf32>,
    return
  }
  func.func @transform_0(%arg0: i32) -> (i32, i32) {
    %c0_i32 = arith.constant 0 : i32
    %c0_i32_0 = arith.constant 0 : i32
    return %arg0, %c0_i32 : i32, i32
  }
  func.func @transform_1(%arg0: i32) -> (i32, i32) {
    %c0_i32 = arith.constant 0 : i32
    %c0_i32_0 = arith.constant 0 : i32
    %c0_i32_1 = arith.constant 0 : i32
    return %c0_i32, %c0_i32_0 : i32, i32
  }
  func.func @transform_2(%arg0: i32) -> (i32, i32) {
    %c0_i32 = arith.constant 0 : i32
    %c0_i32_0 = arith.constant 0 : i32
    %c0_i32_1 = arith.constant 0 : i32
    return %c0_i32, %c0_i32_0 : i32, i32
  }
  func.func @transform_3(%arg0: i32) -> (i32, i32) {
    %c0_i32 = arith.constant 0 : i32
    %c0_i32_0 = arith.constant 0 : i32
    %c0_i32_1 = arith.constant 0 : i32
    return %c0_i32, %c0_i32_0 : i32, i32
  }
  func.func @transform_4(%arg0: i32) -> (i32, i32) {
    %c0_i32 = arith.constant 0 : i32
    %c0_i32_0 = arith.constant 0 : i32
    %c0_i32_1 = arith.constant 0 : i32
    return %c0_i32, %c0_i32_0 : i32, i32
  }
  func.func @transform_5(%arg0: i32) -> (i32, i32) {
    %c0_i32 = arith.constant 0 : i32
    %c0_i32_0 = arith.constant 0 : i32
    return %arg0, %c0_i32 : i32, i32
  }
}

</mosaic_0001>

<llo_original>
// kernel: tpu_custom_call.1
$region0: #{tpu_custom_call.1}
  #allocation0 [shape = 'u32[]', space=smem, size = 0x4, offset = 0x4, fixed_abs, tag = 'smem constant byte address 0x4 - core index']
  #allocation1 [shape = 'u32[144,128]{1,0:T(1,128)}', space=vmem, size = 0x12000, scoped, tag = 'internal scratch']
  %s0 = inlined_call_operand.hbm [shape: f32[128,128], index: 0, kind: input, shape index: {}]
  %s1 = inlined_call_operand.hbm [shape: f32[128,256], index: 1, kind: input, shape index: {}]
  %s2 = inlined_call_operand.vmem [shape: f32[1,256], index: 2, kind: input, shape index: {}]
  %s3 = inlined_call_operand.hbm [shape: f32[256,128], index: 3, kind: input, shape index: {}]
  %s4 = inlined_call_operand.vmem [shape: f32[1,128], index: 4, kind: input, shape index: {}]
  %s5 = inlined_call_operand.hbm [shape: f32[128,128], index: 5, kind: output, shape index: {}]
  %s6 = sld [smem:[#allocation0]]
  $region42: #{tpu_custom_call.1} parent=0
    _
  %s8 = ssub.s32 1, %s6
  %s9 = scalar_select 0, %s8, %s6
  $region1: #{tpu_custom_call.1} parent=0
    #allocation2 [shape = 'u8[65536]{0}', space=vmem, size = 0x10000, scoped, tag = 'input window, operand 0, single buffered']
    #allocation3 [shape = 's32[1]{0}', space=sflag, size = 0x4, scoped, tag = 'scoped memory for tpu_custom_call.1']
    #allocation4 [shape = 's32[1]{0}', space=sflag, size = 0x4, scoped, tag = 'scoped memory for tpu_custom_call.1']
    #allocation5 [shape = 'u8[131072]{0}', space=vmem, size = 0x20000, scoped, tag = 'input window, operand 1, single buffered']
    #allocation6 [shape = 's32[1]{0}', space=sflag, size = 0x4, scoped, tag = 'scoped memory for tpu_custom_call.1']
    #allocation7 [shape = 'u8[131072]{0}', space=vmem, size = 0x20000, scoped, tag = 'input window, operand 3, single buffered']
    #allocation8 [shape = 'u8[65536]{0}', space=vmem, size = 0x10000, scoped, tag = 'output window, operand 0, single buffered']
    %10 = vsyncpa [#allocation3], 0
    %11 = vsyncpa [#allocation6], 0
    %12 = vsyncpa [#allocation4], 0
    // Predicated region
    $region2: #{tpu_custom_call.1} parent=1 // pred_check
      _
    $region3: #{tpu_custom_call.1} parent=1 // pred_check_branch
      %14 = sbr.rel (0) target = $region5
    $region4: #{tpu_custom_call.1} parent=1 // pred_region
      %s16 = ssub.s32 2048, 2048
      %17 = vsyncadd [#allocation3], %s16
      %s18 = sshll.u32 [#allocation2], 4
      %s19 = int_to_ptr.vmem [resolvable:$true] %s18
      %24 = dma.hbm_to_vmem [thread:$0]  %s0, 2048, %s19, [#allocation3], 128, 128, 8
    $region5: #{tpu_custom_call.1} parent=1 // pred_fallthru
      _
    // Predicated region
    $region6: #{tpu_custom_call.1} parent=1 // pred_check
      _
    $region7: #{tpu_custom_call.1} parent=1 // pred_check_branch
      %26 = sbr.rel (0) target = $region9
    $region8: #{tpu_custom_call.1} parent=1 // pred_region
      %s28 = ssub.s32 4096, 4096
      %29 = vsyncadd [#allocation6], %s28
      %s30 = sshll.u32 [#allocation5], 4
      %s31 = int_to_ptr.vmem [resolvable:$true] %s30
      %36 = dma.hbm_to_vmem [thread:$0]  %s1, 4096, %s31, [#allocation6], 256, 256, 16
    $region9: #{tpu_custom_call.1} parent=1 // pred_fallthru
      _
    // Predicated region
    $region10: #{tpu_custom_call.1} parent=1 // pred_check
      _
    $region11: #{tpu_custom_call.1} parent=1 // pred_check_branch
      %38 = sbr.rel (0) target = $region13
    $region12: #{tpu_custom_call.1} parent=1 // pred_region
      _
    $region13: #{tpu_custom_call.1} parent=1 // pred_fallthru
      _
    // Predicated region
    $region14: #{tpu_custom_call.1} parent=1 // pred_check
      _
    $region15: #{tpu_custom_call.1} parent=1 // pred_check_branch
      %40 = sbr.rel (0) target = $region17
    $region16: #{tpu_custom_call.1} parent=1 // pred_region
      %s42 = ssub.s32 4096, 4096
      %43 = vsyncadd [#allocation6], %s42
      %s44 = sshll.u32 [#allocation7], 4
      %s45 = int_to_ptr.vmem [resolvable:$true] %s44
      %50 = dma.hbm_to_vmem [thread:$0]  %s3, 4096, %s45, [#allocation6], 128, 128, 8
    $region17: #{tpu_custom_call.1} parent=1 // pred_fallthru
      _
    // Predicated region
    $region18: #{tpu_custom_call.1} parent=1 // pred_check
      _
    $region19: #{tpu_custom_call.1} parent=1 // pred_check_branch
      %52 = sbr.rel (0) target = $region21
    $region20: #{tpu_custom_call.1} parent=1 // pred_region
      _
    $region21: #{tpu_custom_call.1} parent=1 // pred_fallthru
      _
    // Predicated region
    $region22: #{tpu_custom_call.1} parent=1 // pred_check
      _
    $region23: #{tpu_custom_call.1} parent=1 // pred_check_branch
      %54 = sbr.rel (0) target = $region25
    $region24: #{tpu_custom_call.1} parent=1 // pred_region
      %55 = dma.done [#allocation3], 2048
    $region25: #{tpu_custom_call.1} parent=1 // pred_fallthru
      _
    // Predicated region
    $region26: #{tpu_custom_call.1} parent=1 // pred_check
      _
    $region27: #{tpu_custom_call.1} parent=1 // pred_check_branch
      %57 = sbr.rel (0) target = $region29
    $region28: #{tpu_custom_call.1} parent=1 // pred_region
      %58 = dma.done [#allocation6], 4096
    $region29: #{tpu_custom_call.1} parent=1 // pred_fallthru
      _
    // Predicated region
    $region30: #{tpu_custom_call.1} parent=1 // pred_check
      _
    $region31: #{tpu_custom_call.1} parent=1 // pred_check_branch
      %60 = sbr.rel (0) target = $region33
    $region32: #{tpu_custom_call.1} parent=1 // pred_region
      %61 = dma.done [#allocation6], 4096
    $region33: #{tpu_custom_call.1} parent=1 // pred_fallthru
      _
    %v62 = vld [vmem:[#allocation2] sm:$0xff]
    %v63 = vld [vmem:[#allocation2 + $0x8] sm:$0xff]
    %v64 = vld [vmem:[#allocation2 + $0x10] sm:$0xff]
    %v65 = vld [vmem:[#allocation2 + $0x18] sm:$0xff]
    %v66 = vld [vmem:[#allocation2 + $0x20] sm:$0xff]
    %v67 = vld [vmem:[#allocation2 + $0x28] sm:$0xff]
    %v68 = vld [vmem:[#allocation2 + $0x30] sm:$0xff]
    %v69 = vld [vmem:[#allocation2 + $0x38] sm:$0xff]
    %v70 = vld [vmem:[#allocation2 + $0x40] sm:$0xff]
    %v71 = vld [vmem:[#allocation2 + $0x48] sm:$0xff]
    %v72 = vld [vmem:[#allocation2 + $0x50] sm:$0xff]
    %v73 = vld [vmem:[#allocation2 + $0x58] sm:$0xff]
    %v74 = vld [vmem:[#allocation2 + $0x60] sm:$0xff]
    %v75 = vld [vmem:[#allocation2 + $0x68] sm:$0xff]
    %v76 = vld [vmem:[#allocation2 + $0x70] sm:$0xff]
    %v77 = vld [vmem:[#allocation2 + $0x78] sm:$0xff]
    %v78 = vld [vmem:[#allocation5] sm:$0xff]
    %v79 = vld [vmem:[#allocation5 + $0x8] sm:$0xff]
    %v80 = vld [vmem:[#allocation5 + $0x10] sm:$0xff]
    %v81 = vld [vmem:[#allocation5 + $0x18] sm:$0xff]
    %v82 = vld [vmem:[#allocation5 + $0x20] sm:$0xff]
    %v83 = vld [vmem:[#allocation5 + $0x28] sm:$0xff]
    %v84 = vld [vmem:[#allocation5 + $0x30] sm:$0xff]
    %v85 = vld [vmem:[#allocation5 + $0x38] sm:$0xff]
    %v86 = vld [vmem:[#allocation5 + $0x40] sm:$0xff]
    %v87 = vld [vmem:[#allocation5 + $0x48] sm:$0xff]
    %v88 = vld [vmem:[#allocation5 + $0x50] sm:$0xff]
    %v89 = vld [vmem:[#allocation5 + $0x58] sm:$0xff]
    %v90 = vld [vmem:[#allocation5 + $0x60] sm:$0xff]
    %v91 = vld [vmem:[#allocation5 + $0x68] sm:$0xff]
    %v92 = vld [vmem:[#allocation5 + $0x70] sm:$0xff]
    %v93 = vld [vmem:[#allocation5 + $0x78] sm:$0xff]
    %v94 = vld [vmem:[#allocation5 + $0x80] sm:$0xff]
    %v95 = vld [vmem:[#allocation5 + $0x88] sm:$0xff]
    %v96 = vld [vmem:[#allocation5 + $0x90] sm:$0xff]
    %v97 = vld [vmem:[#allocation5 + $0x98] sm:$0xff]
    %v98 = vld [vmem:[#allocation5 + $0xa0] sm:$0xff]
    %v99 = vld [vmem:[#allocation5 + $0xa8] sm:$0xff]
    %v100 = vld [vmem:[#allocation5 + $0xb0] sm:$0xff]
    %v101 = vld [vmem:[#allocation5 + $0xb8] sm:$0xff]
    %v102 = vld [vmem:[#allocation5 + $0xc0] sm:$0xff]
    %v103 = vld [vmem:[#allocation5 + $0xc8] sm:$0xff]
    %v104 = vld [vmem:[#allocation5 + $0xd0] sm:$0xff]
    %v105 = vld [vmem:[#allocation5 + $0xd8] sm:$0xff]
    %v106 = vld [vmem:[#allocation5 + $0xe0] sm:$0xff]
    %v107 = vld [vmem:[#allocation5 + $0xe8] sm:$0xff]
    %v108 = vld [vmem:[#allocation5 + $0xf0] sm:$0xff]
    %v109 = vld [vmem:[#allocation5 + $0xf8] sm:$0xff]
    %v110 = vld [vmem:[%s2] sm:$0x3]
    %v112 = vlaneseq
    %v113 = vshrl.u32 %v112, 7
    %v114 = vsub.s32 0, %v113
    %v115 = vrot.slane %v110, %v114
    %v116 = vlaneseq
    %v117 = vshrl.u32 %v116, 7
    %v118 = vsub.s32 1, %v117
    %v119 = vrot.slane %v110, %v118
    %122 = vmatprep.subr.mxu0 %v109
    %123 = vmatpush1.msra.mxu0 %v108
    %124 = vmatprep.subr.mxu0 %v107
    %125 = vmatpush1.msra.mxu0 %v106
    %126 = vmatprep.subr.mxu0 %v105
    %127 = vmatpush1.msra.mxu0 %v104
    %128 = vmatprep.subr.mxu0 %v103
    %129 = vmatpush1.msra.mxu0 %v102
    %130 = vmatprep.subr.mxu0 %v101
    %131 = vmatpush1.msra.mxu0 %v100
    %132 = vmatprep.subr.mxu0 %v99
    %133 = vmatpush1.msra.mxu0 %v98
    %134 = vmatprep.subr.mxu0 %v97
    %135 = vmatpush1.msra.mxu0 %v96
    %136 = vmatprep.subr.mxu0 %v95
    %137 = vmatpush1.msra.mxu0 %v94
    %138 = vmatprep.subr.mxu0 %v93
    %139 = vmatpush1.msra.mxu0 %v92
    %140 = vmatprep.subr.mxu0 %v91
    %141 = vmatpush1.msra.mxu0 %v90
    %142 = vmatprep.subr.mxu0 %v89
    %143 = vmatpush1.msra.mxu0 %v88
    %144 = vmatprep.subr.mxu0 %v87
    %145 = vmatpush1.msra.mxu0 %v86
    %146 = vmatprep.subr.mxu0 %v85
    %147 = vmatpush1.msra.mxu0 %v84
    %148 = vmatprep.subr.mxu0 %v83
    %149 = vmatpush1.msra.mxu0 %v82
    %150 = vmatprep.subr.mxu0 %v81
    %151 = vmatpush1.msra.mxu0 %v80
    %152 = vmatprep.subr.mxu0 %v79
    %153 = vmatpush1.msra.mxu0 %v78
    %154 = vmatprep.subr.mxu0 0.0
    %155 = vmatpush2.msra.mxu0 0.0
    %156 = vmatprep.subr.mxu0 0.0
    %157 = vmatpush2.msra.mxu0 0.0
    %158 = vmatprep.subr.mxu0 0.0
    %159 = vmatpush2.msra.mxu0 0.0
    %160 = vmatprep.subr.mxu0 0.0
    %161 = vmatpush2.msra.mxu0 0.0
    %162 = vmatprep.subr.mxu0 0.0
    %163 = vmatpush2.msra.mxu0 0.0
    %164 = vmatprep.subr.mxu0 0.0
    %165 = vmatpush2.msra.mxu0 0.0
    %166 = vmatprep.subr.mxu0 0.0
    %167 = vmatpush2.msra.mxu0 0.0
    %168 = vmatprep.subr.mxu0 0.0
    %169 = vmatpush2.msra.mxu0 0.0
    %170 = vmatprep.subr.mxu0 0.0
    %171 = vmatpush2.msra.mxu0 0.0
    %172 = vmatprep.subr.mxu0 0.0
    %173 = vmatpush2.msra.mxu0 0.0
    %174 = vmatprep.subr.mxu0 0.0
    %175 = vmatpush2.msra.mxu0 0.0
    %176 = vmatprep.subr.mxu0 0.0
    %177 = vmatpush2.msra.mxu0 0.0
    %178 = vmatprep.subr.mxu0 0.0
    %179 = vmatpush2.msra.mxu0 0.0
    %180 = vmatprep.subr.mxu0 0.0
    %181 = vmatpush2.msra.mxu0 0.0
    %182 = vmatprep.subr.mxu0 0.0
    %183 = vmatpush2.msra.mxu0 0.0
    %184 = vmatprep.subr.mxu0 0.0
    %185 = vmatpush2.msra.mxu0 0.0
    %186 = vmatprep.mubr.f32.mxu0 0.0
    %187 = vmatmul.mubr.f32.gmra.mxu0 %v62
    %v188 = vpop.f32.mrf.mxu0
    %v189 = vadd.f32 %v115, %v188
    %v190 = vpop.f32.mrf.mxu0
    %v191 = vadd.f32 %v119, %v190
    %192 = vmatprep.mubr.f32.mxu0 0.0
    %193 = vmatmul.mubr.f32.gmra.mxu0 %v63
    %v194 = vpop.f32.mrf.mxu0
    %v195 = vadd.f32 %v115, %v194
    %v196 = vpop.f32.mrf.mxu0
    %v197 = vadd.f32 %v119, %v196
    %198 = vmatprep.mubr.f32.mxu0 0.0
    %199 = vmatmul.mubr.f32.gmra.mxu0 %v64
    %v200 = vpop.f32.mrf.mxu0
    %v201 = vadd.f32 %v115, %v200
    %v202 = vpop.f32.mrf.mxu0
    %v203 = vadd.f32 %v119, %v202
    %204 = vmatprep.mubr.f32.mxu0 0.0
    %205 = vmatmul.mubr.f32.gmra.mxu0 %v65
    %v206 = vpop.f32.mrf.mxu0
    %v207 = vadd.f32 %v115, %v206
    %v208 = vpop.f32.mrf.mxu0
    %v209 = vadd.f32 %v119, %v208
    %210 = vmatprep.mubr.f32.mxu0 0.0
    %211 = vmatmul.mubr.f32.gmra.mxu0 %v66
    %v212 = vpop.f32.mrf.mxu0
    %v213 = vadd.f32 %v115, %v212
    %v214 = vpop.f32.mrf.mxu0
    %v215 = vadd.f32 %v119, %v214
    %216 = vmatprep.mubr.f32.mxu0 0.0
    %217 = vmatmul.mubr.f32.gmra.mxu0 %v67
    %v218 = vpop.f32.mrf.mxu0
    %v219 = vadd.f32 %v115, %v218
    %v220 = vpop.f32.mrf.mxu0
    %v221 = vadd.f32 %v119, %v220
    %222 = vmatprep.mubr.f32.mxu0 0.0
    %223 = vmatmul.mubr.f32.gmra.mxu0 %v68
    %v224 = vpop.f32.mrf.mxu0
    %v225 = vadd.f32 %v115, %v224
    %v226 = vpop.f32.mrf.mxu0
    %v227 = vadd.f32 %v119, %v226
    %228 = vmatprep.mubr.f32.mxu0 0.0
    %229 = vmatmul.mubr.f32.gmra.mxu0 %v69
    %v230 = vpop.f32.mrf.mxu0
    %v231 = vadd.f32 %v115, %v230
    %v232 = vpop.f32.mrf.mxu0
    %v233 = vadd.f32 %v119, %v232
    %234 = vmatprep.mubr.f32.mxu0 0.0
    %235 = vmatmul.mubr.f32.gmra.mxu0 %v70
    %v236 = vpop.f32.mrf.mxu0
    %v237 = vadd.f32 %v115, %v236
    %v238 = vpop.f32.mrf.mxu0
    %v239 = vadd.f32 %v119, %v238
    %240 = vmatprep.mubr.f32.mxu0 0.0
    %241 = vmatmul.mubr.f32.gmra.mxu0 %v71
    %v242 = vpop.f32.mrf.mxu0
    %v243 = vadd.f32 %v115, %v242
    %v244 = vpop.f32.mrf.mxu0
    %v245 = vadd.f32 %v119, %v244
    %246 = vmatprep.mubr.f32.mxu0 0.0
    %247 = vmatmul.mubr.f32.gmra.mxu0 %v72
    %v248 = vpop.f32.mrf.mxu0
    %v249 = vadd.f32 %v115, %v248
    %v250 = vpop.f32.mrf.mxu0
    %v251 = vadd.f32 %v119, %v250
    %252 = vmatprep.mubr.f32.mxu0 0.0
    %253 = vmatmul.mubr.f32.gmra.mxu0 %v73
    %v254 = vpop.f32.mrf.mxu0
    %v255 = vadd.f32 %v115, %v254
    %v256 = vpop.f32.mrf.mxu0
    %v257 = vadd.f32 %v119, %v256
    %258 = vmatprep.mubr.f32.mxu0 0.0
    %259 = vmatmul.mubr.f32.gmra.mxu0 %v74
    %v260 = vpop.f32.mrf.mxu0
    %v261 = vadd.f32 %v115, %v260
    %v262 = vpop.f32.mrf.mxu0
    %v263 = vadd.f32 %v119, %v262
    %264 = vmatprep.mubr.f32.mxu0 0.0
    %265 = vmatmul.mubr.f32.gmra.mxu0 %v75
    %v266 = vpop.f32.mrf.mxu0
    %v267 = vadd.f32 %v115, %v266
    %v268 = vpop.f32.mrf.mxu0
    %v269 = vadd.f32 %v119, %v268
    %270 = vmatprep.mubr.f32.mxu0 0.0
    %271 = vmatmul.mubr.f32.gmra.mxu0 %v76
    %v272 = vpop.f32.mrf.mxu0
    %v273 = vadd.f32 %v115, %v272
    %v274 = vpop.f32.mrf.mxu0
    %v275 = vadd.f32 %v119, %v274
    %276 = vmatprep.mubr.f32.mxu0 0.0
    %277 = vmatmul.mubr.f32.gmra.mxu0 %v77
    %v278 = vpop.f32.mrf.mxu0
    %v279 = vadd.f32 %v115, %v278
    %v280 = vpop.f32.mrf.mxu0
    %v281 = vadd.f32 %v119, %v280
    %282 = vdwg.mxu0
    %v283 = vmax.f32 %v189, 0.0
    %v284 = vmax.f32 %v191, 0.0
    %v285 = vmax.f32 %v195, 0.0
    %v286 = vmax.f32 %v197, 0.0
    %v287 = vmax.f32 %v201, 0.0
    %v288 = vmax.f32 %v203, 0.0
    %v289 = vmax.f32 %v207, 0.0
    %v290 = vmax.f32 %v209, 0.0
    %v291 = vmax.f32 %v213, 0.0
    %v292 = vmax.f32 %v215, 0.0
    %v293 = vmax.f32 %v219, 0.0
    %v294 = vmax.f32 %v221, 0.0
    %v295 = vmax.f32 %v225, 0.0
    %v296 = vmax.f32 %v227, 0.0
    %v297 = vmax.f32 %v231, 0.0
    %v298 = vmax.f32 %v233, 0.0
    %v299 = vmax.f32 %v237, 0.0
    %v300 = vmax.f32 %v239, 0.0
    %v301 = vmax.f32 %v243, 0.0
    %v302 = vmax.f32 %v245, 0.0
    %v303 = vmax.f32 %v249, 0.0
    %v304 = vmax.f32 %v251, 0.0
    %v305 = vmax.f32 %v255, 0.0
    %v306 = vmax.f32 %v257, 0.0
    %v307 = vmax.f32 %v261, 0.0
    %v308 = vmax.f32 %v263, 0.0
    %v309 = vmax.f32 %v267, 0.0
    %v310 = vmax.f32 %v269, 0.0
    %v311 = vmax.f32 %v273, 0.0
    %v312 = vmax.f32 %v275, 0.0
    %v313 = vmax.f32 %v279, 0.0
    %v314 = vmax.f32 %v281, 0.0
    %v315 = vld [vmem:[#allocation7] sm:$0xff]
    %v316 = vld [vmem:[#allocation7 + $0x8] sm:$0xff]
    %v317 = vld [vmem:[#allocation7 + $0x10] sm:$0xff]
    %v318 = vld [vmem:[#allocation7 + $0x18] sm:$0xff]
    %v319 = vld [vmem:[#allocation7 + $0x20] sm:$0xff]
    %v320 = vld [vmem:[#allocation7 + $0x28] sm:$0xff]
    %v321 = vld [vmem:[#allocation7 + $0x30] sm:$0xff]
    %v322 = vld [vmem:[#allocation7 + $0x38] sm:$0xff]
    %v323 = vld [vmem:[#allocation7 + $0x40] sm:$0xff]
    %v324 = vld [vmem:[#allocation7 + $0x48] sm:$0xff]
    %v325 = vld [vmem:[#allocation7 + $0x50] sm:$0xff]
    %v326 = vld [vmem:[#allocation7 + $0x58] sm:$0xff]
    %v327 = vld [vmem:[#allocation7 + $0x60] sm:$0xff]
    %v328 = vld [vmem:[#allocation7 + $0x68] sm:$0xff]
    %v329 = vld [vmem:[#allocation7 + $0x70] sm:$0xff]
    %v330 = vld [vmem:[#allocation7 + $0x78] sm:$0xff]
    %v331 = vld [vmem:[#allocation7 + $0x80] sm:$0xff]
    %v332 = vld [vmem:[#allocation7 + $0x88] sm:$0xff]
    %v333 = vld [vmem:[#allocation7 + $0x90] sm:$0xff]
    %v334 = vld [vmem:[#allocation7 + $0x98] sm:$0xff]
    %v335 = vld [vmem:[#allocation7 + $0xa0] sm:$0xff]
    %v336 = vld [vmem:[#allocation7 + $0xa8] sm:$0xff]
    %v337 = vld [vmem:[#allocation7 + $0xb0] sm:$0xff]
    %v338 = vld [vmem:[#allocation7 + $0xb8] sm:$0xff]
    %v339 = vld [vmem:[#allocation7 + $0xc0] sm:$0xff]
    %v340 = vld [vmem:[#allocation7 + $0xc8] sm:$0xff]
    %v341 = vld [vmem:[#allocation7 + $0xd0] sm:$0xff]
    %v342 = vld [vmem:[#allocation7 + $0xd8] sm:$0xff]
    %v343 = vld [vmem:[#allocation7 + $0xe0] sm:$0xff]
    %v344 = vld [vmem:[#allocation7 + $0xe8] sm:$0xff]
    %v345 = vld [vmem:[#allocation7 + $0xf0] sm:$0xff]
    %v346 = vld [vmem:[#allocation7 + $0xf8] sm:$0xff]
    %v347 = vld [vmem:[%s4] sm:$0x1]
    %v349 = vlaneseq
    %v350 = vshrl.u32 %v349, 7
    %v351 = vsub.s32 0, %v350
    %v352 = vrot.slane %v347, %v351
    %354 = vmatprep.subr.mxu0 0.0
    %355 = vmatpush1.msra.mxu0 %v330
    %356 = vmatprep.subr.mxu0 0.0
    %357 = vmatpush1.msra.mxu0 %v329
    %358 = vmatprep.subr.mxu0 0.0
    %359 = vmatpush1.msra.mxu0 %v328
    %360 = vmatprep.subr.mxu0 0.0
    %361 = vmatpush1.msra.mxu0 %v327
    %362 = vmatprep.subr.mxu0 0.0
    %363 = vmatpush1.msra.mxu0 %v326
    %364 = vmatprep.subr.mxu0 0.0
    %365 = vmatpush1.msra.mxu0 %v325
    %366 = vmatprep.subr.mxu0 0.0
    %367 = vmatpush1.msra.mxu0 %v324
    %368 = vmatprep.subr.mxu0 0.0
    %369 = vmatpush1.msra.mxu0 %v323
    %370 = vmatprep.subr.mxu0 0.0
    %371 = vmatpush1.msra.mxu0 %v322
    %372 = vmatprep.subr.mxu0 0.0
    %373 = vmatpush1.msra.mxu0 %v321
    %374 = vmatprep.subr.mxu0 0.0
    %375 = vmatpush1.msra.mxu0 %v320
    %376 = vmatprep.subr.mxu0 0.0
    %377 = vmatpush1.msra.mxu0 %v319
    %378 = vmatprep.subr.mxu0 0.0
    %379 = vmatpush1.msra.mxu0 %v318
    %380 = vmatprep.subr.mxu0 0.0
    %381 = vmatpush1.msra.mxu0 %v317
    %382 = vmatprep.subr.mxu0 0.0
    %383 = vmatpush1.msra.mxu0 %v316
    %384 = vmatprep.subr.mxu0 0.0
    %385 = vmatpush1.msra.mxu0 %v315
    %386 = vmatprep.subr.mxu0 0.0
    %387 = vmatpush2.msra.mxu0 %v346
    %388 = vmatprep.subr.mxu0 0.0
    %389 = vmatpush2.msra.mxu0 %v345
    %390 = vmatprep.subr.mxu0 0.0
    %391 = vmatpush2.msra.mxu0 %v344
    %392 = vmatprep.subr.mxu0 0.0
    %393 = vmatpush2.msra.mxu0 %v343
    %394 = vmatprep.subr.mxu0 0.0
    %395 = vmatpush2.msra.mxu0 %v342
    %396 = vmatprep.subr.mxu0 0.0
    %397 = vmatpush2.msra.mxu0 %v341
    %398 = vmatprep.subr.mxu0 0.0
    %399 = vmatpush2.msra.mxu0 %v340
    %400 = vmatprep.subr.mxu0 0.0
    %401 = vmatpush2.msra.mxu0 %v339
    %402 = vmatprep.subr.mxu0 0.0
    %403 = vmatpush2.msra.mxu0 %v338
    %404 = vmatprep.subr.mxu0 0.0
    %405 = vmatpush2.msra.mxu0 %v337
    %406 = vmatprep.subr.mxu0 0.0
    %407 = vmatpush2.msra.mxu0 %v336
    %408 = vmatprep.subr.mxu0 0.0
    %409 = vmatpush2.msra.mxu0 %v335
    %410 = vmatprep.subr.mxu0 0.0
    %411 = vmatpush2.msra.mxu0 %v334
    %412 = vmatprep.subr.mxu0 0.0
    %413 = vmatpush2.msra.mxu0 %v333
    %414 = vmatprep.subr.mxu0 0.0
    %415 = vmatpush2.msra.mxu0 %v332
    %416 = vmatprep.subr.mxu0 0.0
    %417 = vmatpush2.msra.mxu0 %v331
    %418 = vmatprep.mubr.f32.mxu0 %v284
    %419 = vmatmul.mubr.f32.gmra.mxu0 %v283
    %v420 = vpop.f32.mrf.mxu0
    %v421 = vadd.f32 %v352, %v420
    %v422 = vpop.f32.mrf.mxu0
    %423 = vmatprep.mubr.f32.mxu0 %v286
    %424 = vmatmul.mubr.f32.gmra.mxu0 %v285
    %v425 = vpop.f32.mrf.mxu0
    %v426 = vadd.f32 %v352, %v425
    %v427 = vpop.f32.mrf.mxu0
    %428 = vmatprep.mubr.f32.mxu0 %v288
    %429 = vmatmul.mubr.f32.gmra.mxu0 %v287
    %v430 = vpop.f32.mrf.mxu0
    %v431 = vadd.f32 %v352, %v430
    %v432 = vpop.f32.mrf.mxu0
    %433 = vmatprep.mubr.f32.mxu0 %v290
    %434 = vmatmul.mubr.f32.gmra.mxu0 %v289
    %v435 = vpop.f32.mrf.mxu0
    %v436 = vadd.f32 %v352, %v435
    %v437 = vpop.f32.mrf.mxu0
    %438 = vmatprep.mubr.f32.mxu0 %v292
    %439 = vmatmul.mubr.f32.gmra.mxu0 %v291
    %v440 = vpop.f32.mrf.mxu0
    %v441 = vadd.f32 %v352, %v440
    %v442 = vpop.f32.mrf.mxu0
    %443 = vmatprep.mubr.f32.mxu0 %v294
    %444 = vmatmul.mubr.f32.gmra.mxu0 %v293
    %v445 = vpop.f32.mrf.mxu0
    %v446 = vadd.f32 %v352, %v445
    %v447 = vpop.f32.mrf.mxu0
    %448 = vmatprep.mubr.f32.mxu0 %v296
    %449 = vmatmul.mubr.f32.gmra.mxu0 %v295
    %v450 = vpop.f32.mrf.mxu0
    %v451 = vadd.f32 %v352, %v450
    %v452 = vpop.f32.mrf.mxu0
    %453 = vmatprep.mubr.f32.mxu0 %v298
    %454 = vmatmul.mubr.f32.gmra.mxu0 %v297
    %v455 = vpop.f32.mrf.mxu0
    %v456 = vadd.f32 %v352, %v455
    %v457 = vpop.f32.mrf.mxu0
    %458 = vmatprep.mubr.f32.mxu0 %v300
    %459 = vmatmul.mubr.f32.gmra.mxu0 %v299
    %v460 = vpop.f32.mrf.mxu0
    %v461 = vadd.f32 %v352, %v460
    %v462 = vpop.f32.mrf.mxu0
    %463 = vmatprep.mubr.f32.mxu0 %v302
    %464 = vmatmul.mubr.f32.gmra.mxu0 %v301
    %v465 = vpop.f32.mrf.mxu0
    %v466 = vadd.f32 %v352, %v465
    %v467 = vpop.f32.mrf.mxu0
    %468 = vmatprep.mubr.f32.mxu0 %v304
    %469 = vmatmul.mubr.f32.gmra.mxu0 %v303
    %v470 = vpop.f32.mrf.mxu0
    %v471 = vadd.f32 %v352, %v470
    %v472 = vpop.f32.mrf.mxu0
    %473 = vmatprep.mubr.f32.mxu0 %v306
    %474 = vmatmul.mubr.f32.gmra.mxu0 %v305
    %v475 = vpop.f32.mrf.mxu0
    %v476 = vadd.f32 %v352, %v475
    %v477 = vpop.f32.mrf.mxu0
    %478 = vmatprep.mubr.f32.mxu0 %v308
    %479 = vmatmul.mubr.f32.gmra.mxu0 %v307
    %v480 = vpop.f32.mrf.mxu0
    %v481 = vadd.f32 %v352, %v480
    %v482 = vpop.f32.mrf.mxu0
    %483 = vmatprep.mubr.f32.mxu0 %v310
    %484 = vmatmul.mubr.f32.gmra.mxu0 %v309
    %v485 = vpop.f32.mrf.mxu0
    %v486 = vadd.f32 %v352, %v485
    %v487 = vpop.f32.mrf.mxu0
    %488 = vmatprep.mubr.f32.mxu0 %v312
    %489 = vmatmul.mubr.f32.gmra.mxu0 %v311
    %v490 = vpop.f32.mrf.mxu0
    %v491 = vadd.f32 %v352, %v490
    %v492 = vpop.f32.mrf.mxu0
    %493 = vmatprep.mubr.f32.mxu0 %v314
    %494 = vmatmul.mubr.f32.gmra.mxu0 %v313
    %v495 = vpop.f32.mrf.mxu0
    %v496 = vadd.f32 %v352, %v495
    %v497 = vpop.f32.mrf.mxu0
    %498 = vdwg.mxu0
    %499 = vst [vmem:[#allocation8] sm:$0xff] %v421
    %500 = vst [vmem:[#allocation8 + $0x8] sm:$0xff] %v426
    %501 = vst [vmem:[#allocation8 + $0x10] sm:$0xff] %v431
    %502 = vst [vmem:[#allocation8 + $0x18] sm:$0xff] %v436
    %503 = vst [vmem:[#allocation8 + $0x20] sm:$0xff] %v441
    %504 = vst [vmem:[#allocation8 + $0x28] sm:$0xff] %v446
    %505 = vst [vmem:[#allocation8 + $0x30] sm:$0xff] %v451
    %506 = vst [vmem:[#allocation8 + $0x38] sm:$0xff] %v456
    %507 = vst [vmem:[#allocation8 + $0x40] sm:$0xff] %v461
    %508 = vst [vmem:[#allocation8 + $0x48] sm:$0xff] %v466
    %509 = vst [vmem:[#allocation8 + $0x50] sm:$0xff] %v471
    %510 = vst [vmem:[#allocation8 + $0x58] sm:$0xff] %v476
    %511 = vst [vmem:[#allocation8 + $0x60] sm:$0xff] %v481
    %512 = vst [vmem:[#allocation8 + $0x68] sm:$0xff] %v486
    %513 = vst [vmem:[#allocation8 + $0x70] sm:$0xff] %v491
    %514 = vst [vmem:[#allocation8 + $0x78] sm:$0xff] %v496
    // Predicated region
    $region34: #{tpu_custom_call.1} parent=1 // pred_check
      _
    $region35: #{tpu_custom_call.1} parent=1 // pred_check_branch
      %516 = sbr.rel (0) target = $region37
    $region36: #{tpu_custom_call.1} parent=1 // pred_region
      %s518 = ssub.s32 2048, 2048
      %519 = vsyncadd [#allocation4], %s518
      %s520 = sshll.u32 [#allocation8], 4
      %s521 = int_to_ptr.vmem [resolvable:$true] %s520
      %526 = dma.vmem_to_hbm [thread:$0]  %s521, 2048, %s5, [#allocation4], 128, 128, 8
    $region37: #{tpu_custom_call.1} parent=1 // pred_fallthru
      _
    // Predicated region
    $region38: #{tpu_custom_call.1} parent=1 // pred_check
      _
    $region39: #{tpu_custom_call.1} parent=1 // pred_check_branch
      %528 = sbr.rel (0) target = $region41
    $region40: #{tpu_custom_call.1} parent=1 // pred_region
      %529 = dma.done [#allocation4], 2048
    $region41: #{tpu_custom_call.1} parent=1 // pred_fallthru
      _
    %530 = vsyncpa [#allocation3], 1
    %531 = vsyncpa [#allocation6], 1
    %532 = vsyncpa [#allocation4], 1

</llo_original>
